<compile_context>
chip_gen: v6e
topology: v6e:2x2x1
jax: 0.10.0
libtpu: 0.0.40
codegen_flags: <defaults>
</compile_context>

<pallas_src>
import functools

import jax
import jax.numpy as jnp
from jax.experimental import pallas as pl
from jax.experimental.pallas import tpu as pltpu


def _pooling_kernel(q_ref, x_ref, o_ref, acc_ref, m_ref, l_ref, *,
                    scale, s_total, need_mask):
    # q_ref: (1, 1, D), x_ref: (TB, TS, D), o_ref: (TB, D)
    # scratch: acc_ref (TB, D) f32, m_ref/l_ref (TB, 1) f32
    s_idx = pl.program_id(1)
    ns = pl.num_programs(1)

    @pl.when(s_idx == 0)
    def _init():
        m_ref[...] = jnp.full_like(m_ref, -jnp.inf)
        l_ref[...] = jnp.zeros_like(l_ref)
        acc_ref[...] = jnp.zeros_like(acc_ref)

    x = x_ref[...]                                    # (TB, TS, D), stored dtype
    q = q_ref[...].astype(x.dtype)                    # (1, 1, D), broadcasts below

    if need_mask:
        ts = x.shape[1]
        col = s_idx * ts + jax.lax.broadcasted_iota(jnp.int32, (1, ts), 1)
        valid = col < s_total                         # (1, TS)
        # Zero padded sequence positions so stale VMEM can't inject NaN/Inf.
        x = jnp.where(valid[:, :, None], x, 0)

    # scores[b, s] = <q, x[b, s, :]> * scale  — VPU broadcast-multiply + lane
    # reduce over D, f32 accumulation; no (TB,1,S) padded layout, no MXU push.
    scores = jnp.sum((x * q).astype(jnp.float32), axis=-1) * scale   # (TB, TS)
    if need_mask:
        scores = jnp.where(valid, scores, -jnp.inf)

    # Online softmax across the S tiles (normalization deferred).
    m_prev = m_ref[...]                               # (TB, 1)
    m_new = jnp.maximum(m_prev, jnp.max(scores, axis=-1, keepdims=True))
    alpha = jnp.exp(m_prev - m_new)                   # (TB, 1)
    e = jnp.exp(scores - m_new)                       # (TB, TS) f32
    l_ref[...] = alpha * l_ref[...] + jnp.sum(e, axis=-1, keepdims=True)

    # Unnormalized weighted sum of values: broadcast-multiply + reduce over the
    # S tile (dense (TB, D) result; no M=1 batched matmuls pushing x as MXU
    # weights — matters on v7x where HBM is fast enough for that to bind).
    w = e.astype(x.dtype)                             # (TB, TS)
    part = jnp.sum((w[:, :, None] * x).astype(jnp.float32), axis=1)   # (TB, D)
    acc_ref[...] = alpha * acc_ref[...] + part
    m_ref[...] = m_new

    @pl.when(s_idx == ns - 1)
    def _finalize():
        inv = pl.reciprocal(l_ref[...], approx=False)  # exact, keeps 1e-5 parity
        o_ref[...] = (acc_ref[...] * inv).astype(o_ref.dtype)


def _round_up(v, m):
    return -(-v // m) * m


def _select_tiles(B, S, D, x_bytes, out_bytes, vmem_limit_bytes):
    """Pick (TB batch rows, TS sequence positions) per grid step."""
    # Output sublane packing tile: f32 -> 8, bf16 -> 16, int8/fp8 -> 32.
    align = {1: 32, 2: 16, 4: 8}.get(out_bytes, 8)
    budget = max(1 << 20, vmem_limit_bytes - (2 << 20))   # headroom: q bufs, sems

    def row_bytes(ts):
        # Per-batch-row VMEM per grid step: pipeline buffers + f32 temporaries.
        return (2 * ts * D * x_bytes        # double-buffered x block
                + ts * D * 4                # f32 product temporary
                + 4 * ts * 4                # scores / exp / mask temporaries
                + 2 * D * out_bytes         # double-buffered output block
                + D * 4                     # f32 accumulator scratch
                + 2 * 128 * 4)              # m / l scratch rows (lane padded)

    tb_min = B if B < align else align

    if tb_min * row_bytes(S) <= budget:
        # Whole sequence per step.
        if B <= align:
            return B, S                      # full-dim (B, D) output block
        tb_cap = (B // align) * align
        tb = min((budget // row_bytes(S) // align) * align, tb_cap)
        tb = max(tb, align)
        # v7x megacore: aim for >= 2 balanced steps on the (parallel) batch axis.
        nb = pl.cdiv(B, tb)
        if B >= 2 * align:
            if nb == 1:
                tb = _round_up(pl.cdiv(B, 2), align)
            elif nb % 2 == 1:
                cand = _round_up(pl.cdiv(B, nb + 1), align)
                if cand >= align and pl.cdiv(B, cand) % 2 == 0:
                    tb = cand
        return tb, S

    # A single batch row's (S, D) slab exceeds the budget: split the S axis and
    # use the online-softmax accumulators (the kernel handles this uniformly).
    tb = tb_min
    a = 2 * D * x_bytes + D * 4 + 16          # per-(row, seq-pos) bytes
    b = 2 * D * out_bytes + D * 4 + 1024      # per-row constant bytes
    ts = (budget // tb - b) // a
    ts = max(8, (ts // 8) * 8)                # (8,128) constraint on the x block
    ts = min(ts, S)
    # TODO(synk): if even a (tb, 8, D) block overflows VMEM (extremely large D),
    # the D axis would also need splitting with partial-score accumulation.
    return tb, ts


def learnable_pooling(x, query):
    """x: (B, S, D), query: (1, 1, D) -> (B, D). Matches LearnablePooling.forward."""
    B, S, D = x.shape
    scale = 1.0 / (float(D) ** 0.5)
    x_bytes = jnp.dtype(x.dtype).itemsize
    out_bytes = x_bytes

    # Per-core VMEM capacity (v5e/v6e: 128 MiB, v7x: 64 MiB).
    try:
        info = pltpu.get_tpu_info()
        vmem_phys = int(getattr(info, "vmem_capacity_bytes", 64 * 1024 * 1024))
    except Exception:
        vmem_phys = 64 * 1024 * 1024
    # Explicit override: v5e's default scoped VMEM is only 16 MiB.
    vmem_limit = min(int(vmem_phys * 0.85), 112 * 1024 * 1024)

    tb, ts = _select_tiles(B, S, D, x_bytes, out_bytes, vmem_limit)
    nb, ns = pl.cdiv(B, tb), pl.cdiv(S, ts)

    kernel = functools.partial(
        _pooling_kernel, scale=scale, s_total=S, need_mask=(S % ts) != 0)

    return pl.pallas_call(
        kernel,
        out_shape=jax.ShapeDtypeStruct((B, D), x.dtype),
        grid_spec=pltpu.PrefetchScalarGridSpec(
            num_scalar_prefetch=0,
            grid=(nb, ns),
            in_specs=[
                pl.BlockSpec((1, 1, D), lambda b, s: (0, 0, 0)),    # shared query
                pl.BlockSpec((tb, ts, D), lambda b, s: (b, s, 0)),  # x slab
            ],
            out_specs=pl.BlockSpec((tb, D), lambda b, s: (b, 0)),   # dense (B, D)
            scratch_shapes=[
                pltpu.VMEM((tb, D), jnp.float32),   # unnormalized accumulator
                pltpu.VMEM((tb, 1), jnp.float32),   # running max
                pltpu.VMEM((tb, 1), jnp.float32),   # running denominator
            ],
        ),
        compiler_params=pltpu.CompilerParams(
            dimension_semantics=("parallel", "arbitrary"),
            vmem_limit_bytes=vmem_limit,
        ),
    )(query, x)


def _reference(x, query):
    B, S, D = x.shape
    q = jnp.broadcast_to(query, (B, 1, D))
    scores = jnp.einsum("bqd,bsd->bqs", q, x) / (float(D) ** 0.5)
    attn = jax.nn.softmax(scores, axis=-1)
    return jnp.einsum("bqs,bsd->bqd", attn, x)[:, 0, :]


if __name__ == "__main__":
    key = jax.random.PRNGKey(0)
    k_q, k_x = jax.random.split(key)

    B, S, D = 2, 8, 32
    query = jax.random.normal(k_q, (1, 1, D), dtype=jnp.float32)  # torch.randn(1,1,d_model)
    x = jax.random.normal(k_x, (B, S, D), dtype=jnp.float32)

    out = jax.block_until_ready(learnable_pooling(x, query))
    ref = _reference(x, query)

    assert out.shape == (B, D), out.shape
    assert jnp.allclose(out, ref, atol=1e-5, rtol=1e-5), (
        f"max err {float(jnp.max(jnp.abs(out - ref)))}"
    )
    print("KERNEL_OK")
</pallas_src>

<mosaic_0001>
module attributes {stable_mosaic.version = 11 : i64} {
  func.func @_pooling_kernel(%arg0: i32, %arg1: i32, %arg2: memref<1x1x32xf32, #tpu.memory_space<vmem>>, %arg3: memref<2x8x32xf32, #tpu.memory_space<vmem>>, %arg4: memref<2x32xf32, #tpu.memory_space<vmem>>, %arg5: memref<2x32xf32, #tpu.memory_space<vmem>>, %arg6: memref<2x1xf32, #tpu.memory_space<vmem>>, %arg7: memref<2x1xf32, #tpu.memory_space<vmem>>) attributes {dimension_semantics = [#tpu.dimension_semantics<parallel>, #tpu.dimension_semantics<arbitrary>], iteration_bounds = array<i64: 1, 1>, scalar_prefetch = 0 : i64, scratch_operands = 3 : i64, tpu.core_type = #tpu.core_type<tc>, window_params = [{pipeline_mode = #tpu.pipeline_mode<synchronous>, transform_indices = @transform_0, window_bounds = array<i64: 1, 1, 32>}, {transform_indices = @transform_1, window_bounds = array<i64: 2, 8, 32>}, {transform_indices = @transform_2, window_bounds = array<i64: 2, 32>}]} {
    %c0_i32 = arith.constant 0 : i32
    %0 = arith.cmpi eq, %arg1, %c0_i32 : i32
    %1 = arith.extui %0 : i1 to i32
    %c0_i32_0 = arith.constant 0 : i32
    %2 = arith.cmpi ne, %1, %c0_i32_0 : i32
    scf.if %2 {
      %cst_24 = arith.constant 0xFF800000 : f32
      %38 = vector.broadcast %cst_24 : f32 to vector<2x1xf32>
      %c0_25 = arith.constant 0 : index
      %c0_26 = arith.constant 0 : index
      %39 = vector.load %arg6[%c0_25, %c0_26] : memref<2x1xf32, #tpu.memory_space<vmem>>, vector<2x1xf32>
      tpu.vector_store %arg6[%c0_25, %c0_26], %38 {strides = array<i32>} : memref<2x1xf32, #tpu.memory_space<vmem>>, vector<2x1xf32>,
      %cst_27 = arith.constant 0.000000e+00 : f32
      %40 = vector.broadcast %cst_27 : f32 to vector<2x1xf32>
      %c0_28 = arith.constant 0 : index
      %c0_29 = arith.constant 0 : index
      %41 = vector.load %arg7[%c0_28, %c0_29] : memref<2x1xf32, #tpu.memory_space<vmem>>, vector<2x1xf32>
      tpu.vector_store %arg7[%c0_28, %c0_29], %40 {strides = array<i32>} : memref<2x1xf32, #tpu.memory_space<vmem>>, vector<2x1xf32>,
      %cst_30 = arith.constant 0.000000e+00 : f32
      %42 = vector.broadcast %cst_30 : f32 to vector<2x32xf32>
      %c0_31 = arith.constant 0 : index
      %c0_32 = arith.constant 0 : index
      %43 = vector.load %arg5[%c0_31, %c0_32] : memref<2x32xf32, #tpu.memory_space<vmem>>, vector<2x32xf32>
      tpu.vector_store %arg5[%c0_31, %c0_32], %42 {strides = array<i32>} : memref<2x32xf32, #tpu.memory_space<vmem>>, vector<2x32xf32>,
    } else {
    }
    %c0 = arith.constant 0 : index
    %c0_1 = arith.constant 0 : index
    %c0_2 = arith.constant 0 : index
    %3 = vector.load %arg3[%c0, %c0_1, %c0_2] : memref<2x8x32xf32, #tpu.memory_space<vmem>>, vector<2x8x32xf32>
    %c0_3 = arith.constant 0 : index
    %c0_4 = arith.constant 0 : index
    %c0_5 = arith.constant 0 : index
    %4 = vector.load %arg2[%c0_3, %c0_4, %c0_5] : memref<1x1x32xf32, #tpu.memory_space<vmem>>, vector<1x1x32xf32>
    %5 = vector.broadcast %4 : vector<1x1x32xf32> to vector<2x8x32xf32>
    %6 = arith.mulf %3, %5 : vector<2x8x32xf32>
    %cst = arith.constant dense<0.000000e+00> : vector<2x8xf32>
    %7 = vector.multi_reduction <add>, %6, %cst [2] : vector<2x8x32xf32> to vector<2x8xf32>
    %cst_6 = arith.constant 0.176776692 : f32
    %8 = vector.broadcast %cst_6 : f32 to vector<2x8xf32>
    %9 = arith.mulf %7, %8 : vector<2x8xf32>
    %c0_7 = arith.constant 0 : index
    %c0_8 = arith.constant 0 : index
    %10 = vector.load %arg6[%c0_7, %c0_8] : memref<2x1xf32, #tpu.memory_space<vmem>>, vector<2x1xf32>
    %cst_9 = arith.constant dense<0xFF800000> : vector<2xf32>
    %11 = vector.multi_reduction <maximumf>, %9, %cst_9 [1] : vector<2x8xf32> to vector<2xf32>
    %12 = vector.shape_cast %11 : vector<2xf32> to vector<2x1xf32>
    %13 = arith.maximumf %10, %12 : vector<2x1xf32>
    %14 = arith.subf %10, %13 : vector<2x1xf32>
    %15 = math.exp %14 : vector<2x1xf32>
    %16 = vector.broadcast %13 : vector<2x1xf32> to vector<2x8xf32>
    %17 = arith.subf %9, %16 : vector<2x8xf32>
    %18 = math.exp %17 : vector<2x8xf32>
    %c0_10 = arith.constant 0 : index
    %c0_11 = arith.constant 0 : index
    %19 = vector.load %arg7[%c0_10, %c0_11] : memref<2x1xf32, #tpu.memory_space<vmem>>, vector<2x1xf32>
    %20 = arith.mulf %15, %19 : vector<2x1xf32>
    %cst_12 = arith.constant dense<0.000000e+00> : vector<2xf32>
    %21 = vector.multi_reduction <add>, %18, %cst_12 [1] : vector<2x8xf32> to vector<2xf32>
    %22 = vector.shape_cast %21 : vector<2xf32> to vector<2x1xf32>
    %23 = arith.addf %20, %22 : vector<2x1xf32>
    %c0_13 = arith.constant 0 : index
    %c0_14 = arith.constant 0 : index
    %24 = vector.load %arg7[%c0_13, %c0_14] : memref<2x1xf32, #tpu.memory_space<vmem>>, vector<2x1xf32>
    tpu.vector_store %arg7[%c0_13, %c0_14], %23 {strides = array<i32>} : memref<2x1xf32, #tpu.memory_space<vmem>>, vector<2x1xf32>,
    %25 = vector.shape_cast %18 : vector<2x8xf32> to vector<2x8x1xf32>
    %26 = vector.broadcast %25 : vector<2x8x1xf32> to vector<2x8x32xf32>
    %27 = arith.mulf %26, %3 : vector<2x8x32xf32>
    %cst_15 = arith.constant dense<0.000000e+00> : vector<2x32xf32>
    %28 = vector.multi_reduction <add>, %27, %cst_15 [1] : vector<2x8x32xf32> to vector<2x32xf32>
    %c0_16 = arith.constant 0 : index
    %c0_17 = arith.constant 0 : index
    %29 = vector.load %arg5[%c0_16, %c0_17] : memref<2x32xf32, #tpu.memory_space<vmem>>, vector<2x32xf32>
    %30 = vector.broadcast %15 : vector<2x1xf32> to vector<2x32xf32>
    %31 = arith.mulf %30, %29 : vector<2x32xf32>
    %32 = arith.addf %31, %28 : vector<2x32xf32>
    %c0_18 = arith.constant 0 : index
    %c0_19 = arith.constant 0 : index
    %33 = vector.load %arg5[%c0_18, %c0_19] : memref<2x32xf32, #tpu.memory_space<vmem>>, vector<2x32xf32>
    tpu.vector_store %arg5[%c0_18, %c0_19], %32 {strides = array<i32>} : memref<2x32xf32, #tpu.memory_space<vmem>>, vector<2x32xf32>,
    %c0_20 = arith.constant 0 : index
    %c0_21 = arith.constant 0 : index
    %34 = vector.load %arg6[%c0_20, %c0_21] : memref<2x1xf32, #tpu.memory_space<vmem>>, vector<2x1xf32>
    tpu.vector_store %arg6[%c0_20, %c0_21], %13 {strides = array<i32>} : memref<2x1xf32, #tpu.memory_space<vmem>>, vector<2x1xf32>,
    %c0_i32_22 = arith.constant 0 : i32
    %35 = arith.cmpi eq, %arg1, %c0_i32_22 : i32
    %36 = arith.extui %35 : i1 to i32
    %c0_i32_23 = arith.constant 0 : i32
    %37 = arith.cmpi ne, %36, %c0_i32_23 : i32
    scf.if %37 {
      %c0_24 = arith.constant 0 : index
      %c0_25 = arith.constant 0 : index
      %38 = vector.load %arg7[%c0_24, %c0_25] : memref<2x1xf32, #tpu.memory_space<vmem>>, vector<2x1xf32>
      %39 = tpu.reciprocal %38 : vector<2x1xf32> -> vector<2x1xf32>
      %c0_26 = arith.constant 0 : index
      %c0_27 = arith.constant 0 : index
      %40 = vector.load %arg5[%c0_26, %c0_27] : memref<2x32xf32, #tpu.memory_space<vmem>>, vector<2x32xf32>
      %41 = vector.broadcast %39 : vector<2x1xf32> to vector<2x32xf32>
      %42 = arith.mulf %40, %41 : vector<2x32xf32>
      %c0_28 = arith.constant 0 : index
      %c0_29 = arith.constant 0 : index
      %43 = vector.load %arg4[%c0_28, %c0_29] : memref<2x32xf32, #tpu.memory_space<vmem>>, vector<2x32xf32>
      tpu.vector_store %arg4[%c0_28, %c0_29], %42 {strides = array<i32>} : memref<2x32xf32, #tpu.memory_space<vmem>>, vector<2x32xf32>,
    } else {
    }
    return
  }
  func.func @transform_0(%arg0: i32, %arg1: i32) -> (i32, i32, i32) {
    %c0_i32 = arith.constant 0 : i32
    %c0_i32_0 = arith.constant 0 : i32
    %c0_i32_1 = arith.constant 0 : i32
    %c0_i32_2 = arith.constant 0 : i32
    return %c0_i32, %c0_i32_0, %c0_i32_1 : i32, i32, i32
  }
  func.func @transform_1(%arg0: i32, %arg1: i32) -> (i32, i32, i32) {
    %c0_i32 = arith.constant 0 : i32
    %c0_i32_0 = arith.constant 0 : i32
    return %arg0, %arg1, %c0_i32 : i32, i32, i32
  }
  func.func @transform_2(%arg0: i32, %arg1: i32) -> (i32, i32) {
    %c0_i32 = arith.constant 0 : i32
    %c0_i32_0 = arith.constant 0 : i32
    return %arg0, %c0_i32 : i32, i32
  }
}

</mosaic_0001>

<llo_original>
// kernel: tpu_custom_call.1
$region0: #{tpu_custom_call.1}
  #allocation0 [shape = 'u32[]', space=smem, size = 0x4, offset = 0x4, fixed_abs, tag = 'smem constant byte address 0x4 - core index']
  #allocation1 [shape = 'u32[144,128]{1,0:T(1,128)}', space=vmem, size = 0x12000, scoped, tag = 'internal scratch']
  #allocation2 [shape = 'f32[2,32]{1,0:T(2,128)}', space=vmem, size = 0x400, scoped, tag = 'scratch operand']
  #allocation3 [shape = 'f32[2,1]{1,0:T(2,128)}', space=vmem, size = 0x400, scoped, tag = 'scratch operand']
  #allocation4 [shape = 'f32[2,1]{1,0:T(2,128)}', space=vmem, size = 0x400, scoped, tag = 'scratch operand']
  %s0 = inlined_call_operand.hbm [shape: f32[1,1,32], index: 0, kind: input, shape index: {}]
  %s1 = inlined_call_operand.hbm [shape: f32[2,8,32], index: 1, kind: input, shape index: {}]
  %s2 = inlined_call_operand.hbm [shape: f32[2,32], index: 2, kind: output, shape index: {}]
  %s3 = sld [smem:[#allocation0]]
  $region34: #{tpu_custom_call.1} parent=0
    _
  %s5 = ssub.s32 1, %s3
  %s6 = scalar_select 0, %s5, %s3
  $region1: #{tpu_custom_call.1} parent=0
    #allocation5 [shape = 'u8[512]{0}', space=vmem, size = 0x400, scoped, tag = 'input window, operand 0, single buffered']
    #allocation6 [shape = 's32[1]{0}', space=sflag, size = 0x4, scoped, tag = 'scoped memory for tpu_custom_call.1']
    #allocation7 [shape = 's32[1]{0}', space=sflag, size = 0x4, scoped, tag = 'scoped memory for tpu_custom_call.1']
    #allocation8 [shape = 'u8[8192]{0}', space=vmem, size = 0x2000, scoped, tag = 'input window, operand 1, single buffered']
    #allocation9 [shape = 's32[1]{0}', space=sflag, size = 0x4, scoped, tag = 'scoped memory for tpu_custom_call.1']
    #allocation10 [shape = 'u8[1024]{0}', space=vmem, size = 0x400, scoped, tag = 'output window, operand 0, single buffered']
    %7 = vsyncpa [#allocation6], 0
    %8 = vsyncpa [#allocation9], 0
    %9 = vsyncpa [#allocation7], 0
    // Predicated region
    $region2: #{tpu_custom_call.1} parent=1 // pred_check
      _
    $region3: #{tpu_custom_call.1} parent=1 // pred_check_branch
      %11 = sbr.rel (0) target = $region5
    $region4: #{tpu_custom_call.1} parent=1 // pred_region
      %s13 = ssub.s32 16, 16
      %14 = vsyncadd [#allocation6], %s13
      %s16 = sshll.u32 [#allocation5], 4
      %s17 = int_to_ptr.vmem [resolvable:$true] %s16
      %19 = dma.hbm_to_vmem [thread:$0]  %s0, 16, %s17, [#allocation6]
    $region5: #{tpu_custom_call.1} parent=1 // pred_fallthru
      _
    // Predicated region
    $region6: #{tpu_custom_call.1} parent=1 // pred_check
      _
    $region7: #{tpu_custom_call.1} parent=1 // pred_check_branch
      %21 = sbr.rel (0) target = $region9
    $region8: #{tpu_custom_call.1} parent=1 // pred_region
      %s23 = ssub.s32 256, 256
      %24 = vsyncadd [#allocation9], %s23
      %s25 = sshll.u32 [#allocation8], 4
      %s26 = int_to_ptr.vmem [resolvable:$true] %s25
      %31 = dma.hbm_to_vmem [thread:$0]  %s1, 256, %s26, [#allocation9], 128, 128, 8
    $region9: #{tpu_custom_call.1} parent=1 // pred_fallthru
      _
    // Predicated region
    $region10: #{tpu_custom_call.1} parent=1 // pred_check
      _
    $region11: #{tpu_custom_call.1} parent=1 // pred_check_branch
      %33 = sbr.rel (0) target = $region13
    $region12: #{tpu_custom_call.1} parent=1 // pred_region
      %34 = dma.done [#allocation6], 16
    $region13: #{tpu_custom_call.1} parent=1 // pred_fallthru
      _
    // Predicated region
    $region14: #{tpu_custom_call.1} parent=1 // pred_check
      _
    $region15: #{tpu_custom_call.1} parent=1 // pred_check_branch
      %36 = sbr.rel (0) target = $region17
    $region16: #{tpu_custom_call.1} parent=1 // pred_region
      %37 = dma.done [#allocation9], 256
    $region17: #{tpu_custom_call.1} parent=1 // pred_fallthru
      _
    %p38 = scmp.eq.s32.totalorder 0, 0
    // Predicated region
    $region18: #{tpu_custom_call.1} parent=1 // pred_check
      %p39 = pneg %p38
    $region19: #{tpu_custom_call.1} parent=1 // pred_check_branch
      %41 = sbr.rel (%p39) target = $region21
    $region20: #{tpu_custom_call.1} parent=1 // pred_region
      %vm42 = vcmask 1024
      %43 = vst.msk [vmem:[#allocation3] sm:$0x3] %vm42, -inf
      %44 = vst.msk [vmem:[#allocation4] sm:$0x3] %vm42, 0.0
      %vm45 = vcmask 254976
      %46 = vst.msk [vmem:[#allocation2] sm:$0x3] %vm45, 0.0
    $region21: #{tpu_custom_call.1} parent=1 // pred_fallthru
      _
    %v47 = vld [vmem:[#allocation8] sm:$0xff]
    %v48 = vld [vmem:[#allocation8 + $0x8] sm:$0xff]
    %v49 = vld [vmem:[#allocation5] sm:$0x1]
    %v51 = vlaneseq
    %v52 = vshrl.u32 %v51, 7
    %v53 = vsub.s32 0, %v52
    %v54 = vrot.slane %v49, %v53
    %v56 = vmul.f32 %v47, %v54
    %v57 = vmul.f32 %v48, %v54
    %vm58 = vcmask 261120
    %v59 = vsel %vm58, %v56, 0.0
    %60 = vadd.xlane.f32.xlu0 %v59
    %v61 = vpop.xlane.xlu0 %60
    %v62 = vsel %vm58, %v57, 0.0
    %63 = vadd.xlane.f32.xlu0 %v62
    %v64 = vpop.xlane.xlu0 %63
    %v65 = vmul.f32 %v61, 0.17677669
    %v66 = vmul.f32 %v64, 0.17677669
    %v67 = vld [vmem:[#allocation3] sm:$0x3]
    %v70 = vlaneseq
    %v71 = vand.u32 %v70, 127
    %v72 = vlaneseq
    %v73 = vshrl.u32 %v72, 7
    %v74 = vsub.s32 %v71, %v73
    %v75 = vrot.slane %v65, %v74
    %v76 = vlaneseq
    %v77 = vshrl.u32 %v76, 7
    %v78 = vsub.s32 %v71, %v77
    %v79 = vrot.slane %v66, %v78
    %vm80 = vcmask 1041409
    %v81 = vsel %vm80, %v79, %v75
    %vm83 = vcmask 58368
    %v84 = vsel %vm83, %v81, -inf
    %85 = vmax.xlane.f32.xlu0 %v84
    %v86 = vpop.xlane.xlu0 %85
    %v87 = vmax.f32 %v67, %v86
    %v88 = vsub.f32 %v67, %v87
    %v89 = vmul.f32 %v88, 1.442695
    %v90 = vpow.pop %v89
    %92 = vset.pattern.permute.xlu0 0
    %93 = vperm.xlu0 %92, %v87
    %v94 = vpop.permute.xlu0 %93
    %v95 = vlaneseq
    %v96 = vshrl.u32 %v95, 7
    %v97 = vsub.s32 0, %v96
    %v98 = vrot.slane %v94, %v97
    %v99 = vlaneseq
    %v100 = vshrl.u32 %v99, 7
    %v101 = vsub.s32 1, %v100
    %v102 = vrot.slane %v94, %v101
    %v105 = vsub.f32 %v65, %v98
    %v106 = vsub.f32 %v66, %v102
    %v107 = vmul.f32 %v105, 1.442695
    %v108 = vpow.pop %v107
    %v109 = vmul.f32 %v106, 1.442695
    %v110 = vpow.pop %v109
    %v111 = vld [vmem:[#allocation4] sm:$0x3]
    %v112 = vmul.f32 %v90, %v111
    %115 = vset.pattern.permute.xlu0 0
    %116 = vperm.xlu0 %115, %v108
    %v117 = vpop.permute.xlu0 %116
    %118 = vset.pattern.permute.xlu0 0
    %119 = vperm.xlu0 %118, %v110
    %v120 = vpop.permute.xlu0 %119
    %v121 = vlaneseq
    %v122 = vshrl.u32 %v121, 7
    %v123 = vsub.s32 %v71, %v122
    %v124 = vrot.slane %v117, %v123
    %v125 = vlaneseq
    %v126 = vshrl.u32 %v125, 7
    %v127 = vsub.s32 %v71, %v126
    %v128 = vrot.slane %v120, %v127
    %v129 = vsel %vm80, %v128, %v124
    %v131 = vsel %vm83, %v129, 0.0
    %132 = vadd.xlane.f32.xlu0 %v131
    %v133 = vpop.xlane.xlu0 %132
    %v134 = vadd.f32 %v112, %v133
    %vm135 = vcmask 1024
    %136 = vst.msk [vmem:[#allocation4] sm:$0x3] %vm135, %v134
    %v139 = vmul.f32 %v117, %v47
    %v140 = vmul.f32 %v120, %v48
    %v141 = vsel %vm58, %v139, 0.0
    %v142 = vrot.slane %v141, 4
    %v143 = vadd.f32 %v141, %v142
    %v144 = vrot.slane %v143, 2
    %v145 = vadd.f32 %v143, %v144
    %v146 = vrot.slane %v145, 1
    %v147 = vadd.f32 %v145, %v146
    %v148 = vsel %vm58, %v140, 0.0
    %v149 = vrot.slane %v148, 4
    %v150 = vadd.f32 %v148, %v149
    %v151 = vrot.slane %v150, 2
    %v152 = vadd.f32 %v150, %v151
    %v153 = vrot.slane %v152, 1
    %v154 = vadd.f32 %v152, %v153
    %v155 = vld [vmem:[#allocation2] sm:$0x3]
    %157 = vset.pattern.permute.xlu0 0
    %158 = vperm.xlu0 %157, %v90
    %v159 = vpop.permute.xlu0 %158
    %v161 = vmul.f32 %v159, %v155
    %v164 = vsel %vm80, %v154, %v147
    %v166 = vadd.f32 %v161, %v164
    %vm167 = vcmask 254976
    %168 = vst.msk [vmem:[#allocation2] sm:$0x3] %vm167, %v166
    %169 = vst.msk [vmem:[#allocation3] sm:$0x3] %vm135, %v87
    // Predicated region
    $region22: #{tpu_custom_call.1} parent=1 // pred_check
      %p170 = pneg %p38
    $region23: #{tpu_custom_call.1} parent=1 // pred_check_branch
      %172 = sbr.rel (%p170) target = $region25
    $region24: #{tpu_custom_call.1} parent=1 // pred_region
      %v173 = vld [vmem:[#allocation4] sm:$0x3]
      %v174 = vrcp.pop %v173
      %v175 = vld [vmem:[#allocation2] sm:$0x3]
      %177 = vset.pattern.permute.xlu0 0
      %178 = vperm.xlu0 %177, %v174
      %v179 = vpop.permute.xlu0 %178
      %v181 = vmul.f32 %v175, %v179
      %182 = vst.msk [vmem:[#allocation10] sm:$0x3] %vm167, %v181
    $region25: #{tpu_custom_call.1} parent=1 // pred_fallthru
      _
    // Predicated region
    $region26: #{tpu_custom_call.1} parent=1 // pred_check
      _
    $region27: #{tpu_custom_call.1} parent=1 // pred_check_branch
      %184 = sbr.rel (0) target = $region29
    $region28: #{tpu_custom_call.1} parent=1 // pred_region
      %s186 = ssub.s32 32, 32
      %187 = vsyncadd [#allocation7], %s186
      %s189 = sshll.u32 [#allocation10], 4
      %s190 = int_to_ptr.vmem [resolvable:$true] %s189
      %192 = dma.vmem_to_hbm [thread:$0]  %s190, 32, %s2, [#allocation7]
    $region29: #{tpu_custom_call.1} parent=1 // pred_fallthru
      _
    // Predicated region
    $region30: #{tpu_custom_call.1} parent=1 // pred_check
      _
    $region31: #{tpu_custom_call.1} parent=1 // pred_check_branch
      %194 = sbr.rel (0) target = $region33
    $region32: #{tpu_custom_call.1} parent=1 // pred_region
      %195 = dma.done [#allocation7], 32
    $region33: #{tpu_custom_call.1} parent=1 // pred_fallthru
      _
    %196 = vsyncpa [#allocation6], 1
    %197 = vsyncpa [#allocation9], 1
    %198 = vsyncpa [#allocation7], 1

</llo_original>
